<compile_context>
chip_gen: v6e
topology: v6e:2x2x1
jax: 0.10.0
libtpu: 0.0.40
codegen_flags: <defaults>
</compile_context>

<pallas_src>
import jax
import jax.numpy as jnp
from jax import lax
from jax.experimental import pallas as pl
from jax.experimental.pallas import tpu as pltpu  # noqa: F401  (TPU backend)


def rnn_last_hidden_kernel(tok_ref, proj_ref, whh_ref, h_out_ref):
    """Elman-RNN recurrence with embedding + input projection fused in-kernel.

    tok_ref   : (B, T) int32  token ids (VMEM)
    proj_ref  : (V, H) f32    fused table: emb @ W_ih^T + (b_ih + b_hh)
    whh_ref   : (H, H) bf16   hidden->hidden weights, pre-transposed (h @ whh)
    h_out_ref : (B, H) f32    final hidden state (== h.squeeze() in TorchModel)
    """
    B, T = tok_ref.shape
    V = proj_ref.shape[0]

    # Hoisted loads: a handful of vregs each, reused every step.
    tok = tok_ref[...]          # (B, T) int32
    proj = proj_ref[...]        # (V, H) f32
    whh = whh_ref[...]          # (H, H) bf16

    def pre_at(t):
        # In-kernel embedding gather as a one-hot matmul (exact: proj rows are
        # multiplied by 1.0 / 0.0).  Independent of h -> off the serial chain.
        # NOTE: out-of-range token ids yield an all-zero one-hot (pre == 0),
        # whereas PyTorch's nn.Embedding would raise; fine for in-range data.
        onehot = (tok[:, t:t + 1] ==
                  lax.broadcasted_iota(jnp.int32, (B, V), 1)).astype(jnp.float32)
        return jnp.dot(onehot, proj, preferred_element_type=jnp.float32)  # (B, H)

    # t = 0: h_{-1} == 0, so the recurrent matmul contributes nothing.
    h = jnp.tanh(pre_at(0))

    # Static unroll (T is small & static): exactly one bf16 MXU matmul per step
    # on the serial chain; h / tanh stay f32 (no bf16 VPU/EUP on v5e).
    # TODO(synk): benchmark a VPU formulation of the tiny (B,H)@(H,H) step
    # (broadcast-mul + sublane reduce) against the MXU push/pop round trip.
    for t in range(1, T):
        rec = jnp.dot(h.astype(jnp.bfloat16), whh,
                      preferred_element_type=jnp.float32)
        h = jnp.tanh(pre_at(t) + rec)

    h_out_ref[...] = h.astype(h_out_ref.dtype)
    # TODO(synk): H=32 < 128 => masked partial store; only worth padding /
    # packing to a lane-dense slab if B, H, or the call count grows.


def torch_model_forward(x_tokens, params, y=None):
    """Equivalent of TorchModel.forward: returns h.squeeze() or cross_entropy(h, y)."""
    emb = params["embedding"]  # (V, D), row 0 zeroed (padding_idx=0)
    w_ih = params["w_ih"]      # (H, D)  PyTorch weight_ih_l0 layout
    w_hh = params["w_hh"]      # (H, H)  PyTorch weight_hh_l0 layout
    b_ih = params["b_ih"]      # (H,)
    b_hh = params["b_hh"]      # (H,)

    B, T = x_tokens.shape
    V, _ = emb.shape
    H = w_ih.shape[0]

    # Fold the input projection into the embedding table (done once, V tiny):
    #   proj_table[v] = emb[v] @ W_ih^T + (b_ih + b_hh)            shape (V, H)
    # emb[0] == 0 => proj_table[0] == bias, exactly what a padding token
    # contributes to the pre-activation, so padding_idx=0 semantics hold.
    proj_table = (jnp.dot(emb, w_ih.T, preferred_element_type=jnp.float32)
                  + (b_ih + b_hh))

    # bf16 operands for the serial recurrent matmul (f32 accumulate in-kernel).
    whh_t = jnp.transpose(w_hh).astype(jnp.bfloat16)   # (H, H); step is h @ whh

    h = pl.pallas_call(
        rnn_last_hidden_kernel,
        out_shape=jax.ShapeDtypeStruct((B, H), jnp.float32),
        in_specs=[
            pl.BlockSpec((B, T), lambda: (0, 0)),   # token ids
            pl.BlockSpec((V, H), lambda: (0, 0)),   # fused projection table
            pl.BlockSpec((H, H), lambda: (0, 0)),   # W_hh^T (bf16)
        ],
        out_specs=pl.BlockSpec((B, H), lambda: (0, 0)),
        # Single block, tiny working set: no grid, no pipelining/VMEM knobs.
        # TODO(synk): if B grows beyond one tile, add a grid over B with
        # dimension_semantics=("parallel",) to use both v7x TensorCores.
    )(x_tokens.astype(jnp.int32), proj_table, whh_t)

    if y is not None:
        # nn.functional.cross_entropy(h, y) with integer class targets (mean).
        logits = h
        logz = jax.nn.logsumexp(logits, axis=-1)
        picked = jnp.take_along_axis(logits, y[:, None], axis=-1)[:, 0]
        return jnp.mean(logz - picked)
    return h


def rnn_reference(x_tokens, params):
    """Pure-JAX reference of the same forward (for an in-script sanity check)."""
    emb = params["embedding"]
    w_ih = params["w_ih"]
    w_hh = params["w_hh"]
    b = params["b_ih"] + params["b_hh"]
    x = jnp.take(emb, x_tokens, axis=0)              # (B, T, D)
    B, T, _ = x.shape
    H = w_ih.shape[0]
    h = jnp.zeros((B, H), jnp.float32)
    for t in range(T):
        h = jnp.tanh(x[:, t, :] @ w_ih.T + h @ w_hh.T + b)
    return h


def init_params(key, vocab_size, vector_num, word_length):
    """Deterministic init matching the parameter shapes of TorchModel."""
    k_emb, k_wih, k_whh, k_bih, k_bhh = jax.random.split(key, 5)
    scale = 1.0 / jnp.sqrt(jnp.float32(word_length))

    embedding = jax.random.normal(k_emb, (vocab_size, vector_num), jnp.float32)
    embedding = embedding.at[0].set(0.0)  # padding_idx=0 row is zeros

    w_ih = jax.random.uniform(k_wih, (word_length, vector_num), jnp.float32,
                              -scale, scale)
    w_hh = jax.random.uniform(k_whh, (word_length, word_length), jnp.float32,
                              -scale, scale)
    b_ih = jax.random.uniform(k_bih, (word_length,), jnp.float32, -scale, scale)
    b_hh = jax.random.uniform(k_bhh, (word_length,), jnp.float32, -scale, scale)

    return {"embedding": embedding, "w_ih": w_ih, "w_hh": w_hh,
            "b_ih": b_ih, "b_hh": b_hh}


if __name__ == "__main__":
    # Small shapes consistent with the module's forward.
    vocab_size, vector_num, word_length = 16, 32, 32
    batch, seq = 4, 8

    key = jax.random.PRNGKey(0)
    k_params, k_x, k_y = jax.random.split(key, 3)

    params = init_params(k_params, vocab_size, vector_num, word_length)
    x = jax.random.randint(k_x, (batch, seq), 0, vocab_size, dtype=jnp.int32)
    y = jax.random.randint(k_y, (batch,), 0, word_length, dtype=jnp.int32)

    fwd = jax.jit(torch_model_forward)

    # Inference path (y=None): returns h.squeeze() of shape (batch, word_length).
    h = fwd(x, params)
    h = jax.block_until_ready(h)
    assert h.shape == (batch, word_length)

    # Sanity check against the pure-JAX f32 reference.  Tolerance covers the
    # bf16 recurrent-matmul operands (f32 accumulate) and default wrapper
    # matmul precision, per the review.
    h_ref = jax.block_until_ready(rnn_reference(x, params))
    assert jnp.allclose(h, h_ref, atol=5e-2, rtol=5e-2), "mismatch vs reference"

    # Loss path (y provided): scalar cross-entropy (glue in plain JAX).
    loss = fwd(x, params, y)
    loss = jax.block_until_ready(loss)
    assert loss.shape == ()

    print("KERNEL_OK")
</pallas_src>

<mosaic_0001>
module attributes {stable_mosaic.version = 11 : i64} {
  func.func @rnn_last_hidden_kernel(%arg0: memref<4x8xi32, #tpu.memory_space<vmem>>, %arg1: memref<16x32xf32, #tpu.memory_space<vmem>>, %arg2: memref<32x32xbf16, #tpu.memory_space<vmem>>, %arg3: memref<4x32xf32, #tpu.memory_space<vmem>>) attributes {dimension_semantics = [], scalar_prefetch = 0 : i64, scratch_operands = 0 : i64, tpu.core_type = #tpu.core_type<tc>} {
    %c0 = arith.constant 0 : index
    %c0_0 = arith.constant 0 : index
    %0 = vector.load %arg0[%c0, %c0_0] : memref<4x8xi32, #tpu.memory_space<vmem>>, vector<4x8xi32>
    %c0_1 = arith.constant 0 : index
    %c0_2 = arith.constant 0 : index
    %1 = vector.load %arg1[%c0_1, %c0_2] : memref<16x32xf32, #tpu.memory_space<vmem>>, vector<16x32xf32>
    %c0_3 = arith.constant 0 : index
    %c0_4 = arith.constant 0 : index
    %2 = vector.load %arg2[%c0_3, %c0_4] : memref<32x32xbf16, #tpu.memory_space<vmem>>, vector<32x32xbf16>
    %3 = vector.extract_strided_slice %0 {offsets = [0, 0], sizes = [4, 1], strides = [1, 1]} : vector<4x8xi32> to vector<4x1xi32>
    %4 = tpu.iota {dimensions = array<i32: 1>} : vector<4x16xi32>
    %5 = vector.broadcast %3 : vector<4x1xi32> to vector<4x16xi32>
    %6 = arith.cmpi eq, %5, %4 : vector<4x16xi32>
    %7 = arith.extui %6 : vector<4x16xi1> to vector<4x16xi32>
    %8 = arith.sitofp %7 : vector<4x16xi32> to vector<4x16xf32>
    %cst = arith.constant dense<0.000000e+00> : vector<4x32xf32>
    %9 = tpu.matmul %8, %1, %cst {dimension_numbers = #tpu.dot_dimension_numbers<[1], [0], [0], [1], [0, 0, 1, 1], [], []>} : vector<4x16xf32>, vector<16x32xf32>, vector<4x32xf32> -> vector<4x32xf32>
    %10 = math.tanh %9 : vector<4x32xf32>
    %11 = arith.truncf %10 : vector<4x32xf32> to vector<4x32xbf16>
    %cst_5 = arith.constant dense<0.000000e+00> : vector<4x32xf32>
    %12 = tpu.matmul %11, %2, %cst_5 {dimension_numbers = #tpu.dot_dimension_numbers<[1], [0], [0], [1], [0, 0, 1, 1], [], []>} : vector<4x32xbf16>, vector<32x32xbf16>, vector<4x32xf32> -> vector<4x32xf32>
    %13 = vector.extract_strided_slice %0 {offsets = [0, 1], sizes = [4, 1], strides = [1, 1]} : vector<4x8xi32> to vector<4x1xi32>
    %14 = tpu.iota {dimensions = array<i32: 1>} : vector<4x16xi32>
    %15 = vector.broadcast %13 : vector<4x1xi32> to vector<4x16xi32>
    %16 = arith.cmpi eq, %15, %14 : vector<4x16xi32>
    %17 = arith.extui %16 : vector<4x16xi1> to vector<4x16xi32>
    %18 = arith.sitofp %17 : vector<4x16xi32> to vector<4x16xf32>
    %cst_6 = arith.constant dense<0.000000e+00> : vector<4x32xf32>
    %19 = tpu.matmul %18, %1, %cst_6 {dimension_numbers = #tpu.dot_dimension_numbers<[1], [0], [0], [1], [0, 0, 1, 1], [], []>} : vector<4x16xf32>, vector<16x32xf32>, vector<4x32xf32> -> vector<4x32xf32>
    %20 = arith.addf %19, %12 : vector<4x32xf32>
    %21 = math.tanh %20 : vector<4x32xf32>
    %22 = arith.truncf %21 : vector<4x32xf32> to vector<4x32xbf16>
    %cst_7 = arith.constant dense<0.000000e+00> : vector<4x32xf32>
    %23 = tpu.matmul %22, %2, %cst_7 {dimension_numbers = #tpu.dot_dimension_numbers<[1], [0], [0], [1], [0, 0, 1, 1], [], []>} : vector<4x32xbf16>, vector<32x32xbf16>, vector<4x32xf32> -> vector<4x32xf32>
    %24 = vector.extract_strided_slice %0 {offsets = [0, 2], sizes = [4, 1], strides = [1, 1]} : vector<4x8xi32> to vector<4x1xi32>
    %25 = tpu.iota {dimensions = array<i32: 1>} : vector<4x16xi32>
    %26 = vector.broadcast %24 : vector<4x1xi32> to vector<4x16xi32>
    %27 = arith.cmpi eq, %26, %25 : vector<4x16xi32>
    %28 = arith.extui %27 : vector<4x16xi1> to vector<4x16xi32>
    %29 = arith.sitofp %28 : vector<4x16xi32> to vector<4x16xf32>
    %cst_8 = arith.constant dense<0.000000e+00> : vector<4x32xf32>
    %30 = tpu.matmul %29, %1, %cst_8 {dimension_numbers = #tpu.dot_dimension_numbers<[1], [0], [0], [1], [0, 0, 1, 1], [], []>} : vector<4x16xf32>, vector<16x32xf32>, vector<4x32xf32> -> vector<4x32xf32>
    %31 = arith.addf %30, %23 : vector<4x32xf32>
    %32 = math.tanh %31 : vector<4x32xf32>
    %33 = arith.truncf %32 : vector<4x32xf32> to vector<4x32xbf16>
    %cst_9 = arith.constant dense<0.000000e+00> : vector<4x32xf32>
    %34 = tpu.matmul %33, %2, %cst_9 {dimension_numbers = #tpu.dot_dimension_numbers<[1], [0], [0], [1], [0, 0, 1, 1], [], []>} : vector<4x32xbf16>, vector<32x32xbf16>, vector<4x32xf32> -> vector<4x32xf32>
    %35 = vector.extract_strided_slice %0 {offsets = [0, 3], sizes = [4, 1], strides = [1, 1]} : vector<4x8xi32> to vector<4x1xi32>
    %36 = tpu.iota {dimensions = array<i32: 1>} : vector<4x16xi32>
    %37 = vector.broadcast %35 : vector<4x1xi32> to vector<4x16xi32>
    %38 = arith.cmpi eq, %37, %36 : vector<4x16xi32>
    %39 = arith.extui %38 : vector<4x16xi1> to vector<4x16xi32>
    %40 = arith.sitofp %39 : vector<4x16xi32> to vector<4x16xf32>
    %cst_10 = arith.constant dense<0.000000e+00> : vector<4x32xf32>
    %41 = tpu.matmul %40, %1, %cst_10 {dimension_numbers = #tpu.dot_dimension_numbers<[1], [0], [0], [1], [0, 0, 1, 1], [], []>} : vector<4x16xf32>, vector<16x32xf32>, vector<4x32xf32> -> vector<4x32xf32>
    %42 = arith.addf %41, %34 : vector<4x32xf32>
    %43 = math.tanh %42 : vector<4x32xf32>
    %44 = arith.truncf %43 : vector<4x32xf32> to vector<4x32xbf16>
    %cst_11 = arith.constant dense<0.000000e+00> : vector<4x32xf32>
    %45 = tpu.matmul %44, %2, %cst_11 {dimension_numbers = #tpu.dot_dimension_numbers<[1], [0], [0], [1], [0, 0, 1, 1], [], []>} : vector<4x32xbf16>, vector<32x32xbf16>, vector<4x32xf32> -> vector<4x32xf32>
    %46 = vector.extract_strided_slice %0 {offsets = [0, 4], sizes = [4, 1], strides = [1, 1]} : vector<4x8xi32> to vector<4x1xi32>
    %47 = tpu.iota {dimensions = array<i32: 1>} : vector<4x16xi32>
    %48 = vector.broadcast %46 : vector<4x1xi32> to vector<4x16xi32>
    %49 = arith.cmpi eq, %48, %47 : vector<4x16xi32>
    %50 = arith.extui %49 : vector<4x16xi1> to vector<4x16xi32>
    %51 = arith.sitofp %50 : vector<4x16xi32> to vector<4x16xf32>
    %cst_12 = arith.constant dense<0.000000e+00> : vector<4x32xf32>
    %52 = tpu.matmul %51, %1, %cst_12 {dimension_numbers = #tpu.dot_dimension_numbers<[1], [0], [0], [1], [0, 0, 1, 1], [], []>} : vector<4x16xf32>, vector<16x32xf32>, vector<4x32xf32> -> vector<4x32xf32>
    %53 = arith.addf %52, %45 : vector<4x32xf32>
    %54 = math.tanh %53 : vector<4x32xf32>
    %55 = arith.truncf %54 : vector<4x32xf32> to vector<4x32xbf16>
    %cst_13 = arith.constant dense<0.000000e+00> : vector<4x32xf32>
    %56 = tpu.matmul %55, %2, %cst_13 {dimension_numbers = #tpu.dot_dimension_numbers<[1], [0], [0], [1], [0, 0, 1, 1], [], []>} : vector<4x32xbf16>, vector<32x32xbf16>, vector<4x32xf32> -> vector<4x32xf32>
    %57 = vector.extract_strided_slice %0 {offsets = [0, 5], sizes = [4, 1], strides = [1, 1]} : vector<4x8xi32> to vector<4x1xi32>
    %58 = tpu.iota {dimensions = array<i32: 1>} : vector<4x16xi32>
    %59 = vector.broadcast %57 : vector<4x1xi32> to vector<4x16xi32>
    %60 = arith.cmpi eq, %59, %58 : vector<4x16xi32>
    %61 = arith.extui %60 : vector<4x16xi1> to vector<4x16xi32>
    %62 = arith.sitofp %61 : vector<4x16xi32> to vector<4x16xf32>
    %cst_14 = arith.constant dense<0.000000e+00> : vector<4x32xf32>
    %63 = tpu.matmul %62, %1, %cst_14 {dimension_numbers = #tpu.dot_dimension_numbers<[1], [0], [0], [1], [0, 0, 1, 1], [], []>} : vector<4x16xf32>, vector<16x32xf32>, vector<4x32xf32> -> vector<4x32xf32>
    %64 = arith.addf %63, %56 : vector<4x32xf32>
    %65 = math.tanh %64 : vector<4x32xf32>
    %66 = arith.truncf %65 : vector<4x32xf32> to vector<4x32xbf16>
    %cst_15 = arith.constant dense<0.000000e+00> : vector<4x32xf32>
    %67 = tpu.matmul %66, %2, %cst_15 {dimension_numbers = #tpu.dot_dimension_numbers<[1], [0], [0], [1], [0, 0, 1, 1], [], []>} : vector<4x32xbf16>, vector<32x32xbf16>, vector<4x32xf32> -> vector<4x32xf32>
    %68 = vector.extract_strided_slice %0 {offsets = [0, 6], sizes = [4, 1], strides = [1, 1]} : vector<4x8xi32> to vector<4x1xi32>
    %69 = tpu.iota {dimensions = array<i32: 1>} : vector<4x16xi32>
    %70 = vector.broadcast %68 : vector<4x1xi32> to vector<4x16xi32>
    %71 = arith.cmpi eq, %70, %69 : vector<4x16xi32>
    %72 = arith.extui %71 : vector<4x16xi1> to vector<4x16xi32>
    %73 = arith.sitofp %72 : vector<4x16xi32> to vector<4x16xf32>
    %cst_16 = arith.constant dense<0.000000e+00> : vector<4x32xf32>
    %74 = tpu.matmul %73, %1, %cst_16 {dimension_numbers = #tpu.dot_dimension_numbers<[1], [0], [0], [1], [0, 0, 1, 1], [], []>} : vector<4x16xf32>, vector<16x32xf32>, vector<4x32xf32> -> vector<4x32xf32>
    %75 = arith.addf %74, %67 : vector<4x32xf32>
    %76 = math.tanh %75 : vector<4x32xf32>
    %77 = arith.truncf %76 : vector<4x32xf32> to vector<4x32xbf16>
    %cst_17 = arith.constant dense<0.000000e+00> : vector<4x32xf32>
    %78 = tpu.matmul %77, %2, %cst_17 {dimension_numbers = #tpu.dot_dimension_numbers<[1], [0], [0], [1], [0, 0, 1, 1], [], []>} : vector<4x32xbf16>, vector<32x32xbf16>, vector<4x32xf32> -> vector<4x32xf32>
    %79 = vector.extract_strided_slice %0 {offsets = [0, 7], sizes = [4, 1], strides = [1, 1]} : vector<4x8xi32> to vector<4x1xi32>
    %80 = tpu.iota {dimensions = array<i32: 1>} : vector<4x16xi32>
    %81 = vector.broadcast %79 : vector<4x1xi32> to vector<4x16xi32>
    %82 = arith.cmpi eq, %81, %80 : vector<4x16xi32>
    %83 = arith.extui %82 : vector<4x16xi1> to vector<4x16xi32>
    %84 = arith.sitofp %83 : vector<4x16xi32> to vector<4x16xf32>
    %cst_18 = arith.constant dense<0.000000e+00> : vector<4x32xf32>
    %85 = tpu.matmul %84, %1, %cst_18 {dimension_numbers = #tpu.dot_dimension_numbers<[1], [0], [0], [1], [0, 0, 1, 1], [], []>} : vector<4x16xf32>, vector<16x32xf32>, vector<4x32xf32> -> vector<4x32xf32>
    %86 = arith.addf %85, %78 : vector<4x32xf32>
    %87 = math.tanh %86 : vector<4x32xf32>
    %c0_19 = arith.constant 0 : index
    %c0_20 = arith.constant 0 : index
    %88 = vector.load %arg3[%c0_19, %c0_20] : memref<4x32xf32, #tpu.memory_space<vmem>>, vector<4x32xf32>
    tpu.vector_store %arg3[%c0_19, %c0_20], %87 {strides = array<i32>} : memref<4x32xf32, #tpu.memory_space<vmem>>, vector<4x32xf32>,
    return
  }
}

</mosaic_0001>

<llo_original>
// kernel: torch_model_forward.1
$region0: #{torch_model_forward.1}
  #allocation0 [shape = 'u32[]', space=smem, size = 0x4, offset = 0x4, fixed_abs, tag = 'smem constant byte address 0x4 - core index']
  #allocation1 [shape = 'u32[144,128]{1,0:T(1,128)}', space=vmem, size = 0x12000, scoped, tag = 'internal scratch']
  %s0 = inlined_call_operand.vmem [shape: s32[4,8], index: 0, kind: input, shape index: {}]
  %s1 = inlined_call_operand.vmem [shape: f32[16,32], index: 1, kind: input, shape index: {}]
  %s2 = inlined_call_operand.vmem [shape: bf16[32,32], index: 2, kind: input, shape index: {}]
  %s3 = inlined_call_operand.hbm [shape: f32[4,32], index: 3, kind: output, shape index: {}]
  %s4 = sld [smem:[#allocation0]]
  $region22: #{torch_model_forward.1} parent=0
    _
  %s6 = ssub.s32 1, %s4
  %s7 = scalar_select 0, %s6, %s4
  $region1: #{torch_model_forward.1} parent=0
    #allocation2 [shape = 'u8[2048]{0}', space=vmem, size = 0x800, scoped, tag = 'output window, operand 0, single buffered']
    #allocation3 [shape = 's32[1]{0}', space=sflag, size = 0x4, scoped, tag = 'scoped memory for torch_model_forward.1']
    %8 = vsyncpa [#allocation3], 0
    // Predicated region
    $region2: #{torch_model_forward.1} parent=1 // pred_check
      _
    $region3: #{torch_model_forward.1} parent=1 // pred_check_branch
      %10 = sbr.rel (0) target = $region5
    $region4: #{torch_model_forward.1} parent=1 // pred_region
      _
    $region5: #{torch_model_forward.1} parent=1 // pred_fallthru
      _
    // Predicated region
    $region6: #{torch_model_forward.1} parent=1 // pred_check
      _
    $region7: #{torch_model_forward.1} parent=1 // pred_check_branch
      %12 = sbr.rel (0) target = $region9
    $region8: #{torch_model_forward.1} parent=1 // pred_region
      _
    $region9: #{torch_model_forward.1} parent=1 // pred_fallthru
      _
    // Predicated region
    $region10: #{torch_model_forward.1} parent=1 // pred_check
      _
    $region11: #{torch_model_forward.1} parent=1 // pred_check_branch
      %14 = sbr.rel (0) target = $region13
    $region12: #{torch_model_forward.1} parent=1 // pred_region
      _
    $region13: #{torch_model_forward.1} parent=1 // pred_fallthru
      _
    %v16 = vld [vmem:[%s0] sm:$0xf]
    %v17 = vld [vmem:[%s1] sm:$0xff]
    %v18 = vld [vmem:[%s1 + $0x8] sm:$0xff]
    %v19 = vld [vmem:[%s2] sm:$0xf]
    %v20 = vld [vmem:[%s2 + $0x4] sm:$0xf]
    %v21 = vld [vmem:[%s2 + $0x8] sm:$0xf]
    %v22 = vld [vmem:[%s2 + $0xc] sm:$0xf]
    %v23 = vlaneseq
    %v24 = vand.u32 %v23, 127
    %25 = vset.pattern.permute.xlu0 0
    %26 = vperm.xlu0 %25, %v16
    %v27 = vpop.permute.xlu0 %26
    %vm28 = vcmp.eq.s32.totalorder %v27, %v24
    %v29 = vsel %vm28, 1, 0
    %v30 = vcvt.s32.f32 %v29
    %vm31 = vcmask 130048
    %v33 = vsel %vm31, %v30, 0
    %35 = vmatprep.subr.mxu0 0.0
    %36 = vmatpush1.msra.mxu0 0.0
    %37 = vmatprep.subr.mxu0 0.0
    %38 = vmatpush1.msra.mxu0 0.0
    %39 = vmatprep.subr.mxu0 0.0
    %40 = vmatpush1.msra.mxu0 0.0
    %41 = vmatprep.subr.mxu0 0.0
    %42 = vmatpush1.msra.mxu0 0.0
    %43 = vmatprep.subr.mxu0 0.0
    %44 = vmatpush1.msra.mxu0 0.0
    %45 = vmatprep.subr.mxu0 0.0
    %46 = vmatpush1.msra.mxu0 0.0
    %47 = vmatprep.subr.mxu0 0.0
    %48 = vmatpush1.msra.mxu0 0.0
    %49 = vmatprep.subr.mxu0 0.0
    %50 = vmatpush1.msra.mxu0 0.0
    %51 = vmatprep.subr.mxu0 0.0
    %52 = vmatpush1.msra.mxu0 0.0
    %53 = vmatprep.subr.mxu0 0.0
    %54 = vmatpush1.msra.mxu0 0.0
    %55 = vmatprep.subr.mxu0 0.0
    %56 = vmatpush1.msra.mxu0 0.0
    %57 = vmatprep.subr.mxu0 0.0
    %58 = vmatpush1.msra.mxu0 0.0
    %59 = vmatprep.subr.mxu0 0.0
    %60 = vmatpush1.msra.mxu0 0.0
    %61 = vmatprep.subr.mxu0 0.0
    %62 = vmatpush1.msra.mxu0 0.0
    %63 = vmatprep.subr.mxu0 0.0
    %64 = vmatpush1.msra.mxu0 %v18
    %65 = vmatprep.subr.mxu0 0.0
    %66 = vmatpush1.msra.mxu0 %v17
    %67 = vmatprep.subr.mxu0 0.0
    %68 = vmatpush2.msra.mxu0 0.0
    %69 = vmatprep.subr.mxu0 0.0
    %70 = vmatpush2.msra.mxu0 0.0
    %71 = vmatprep.subr.mxu0 0.0
    %72 = vmatpush2.msra.mxu0 0.0
    %73 = vmatprep.subr.mxu0 0.0
    %74 = vmatpush2.msra.mxu0 0.0
    %75 = vmatprep.subr.mxu0 0.0
    %76 = vmatpush2.msra.mxu0 0.0
    %77 = vmatprep.subr.mxu0 0.0
    %78 = vmatpush2.msra.mxu0 0.0
    %79 = vmatprep.subr.mxu0 0.0
    %80 = vmatpush2.msra.mxu0 0.0
    %81 = vmatprep.subr.mxu0 0.0
    %82 = vmatpush2.msra.mxu0 0.0
    %83 = vmatprep.subr.mxu0 0.0
    %84 = vmatpush2.msra.mxu0 0.0
    %85 = vmatprep.subr.mxu0 0.0
    %86 = vmatpush2.msra.mxu0 0.0
    %87 = vmatprep.subr.mxu0 0.0
    %88 = vmatpush2.msra.mxu0 0.0
    %89 = vmatprep.subr.mxu0 0.0
    %90 = vmatpush2.msra.mxu0 0.0
    %91 = vmatprep.subr.mxu0 0.0
    %92 = vmatpush2.msra.mxu0 0.0
    %93 = vmatprep.subr.mxu0 0.0
    %94 = vmatpush2.msra.mxu0 0.0
    %95 = vmatprep.subr.mxu0 0.0
    %96 = vmatpush2.msra.mxu0 0.0
    %97 = vmatprep.subr.mxu0 0.0
    %98 = vmatpush2.msra.mxu0 0.0
    %99 = vmatprep.mubr.f32.mxu0 0.0
    %100 = vmatmul.mubr.f32.gmra.mxu0 %v33
    %v101 = vpop.f32.mrf.mxu0
    %v102 = vadd.f32 0.0, %v101
    %v103 = vpop.f32.mrf.mxu0
    %104 = vdwg.mxu0
    %v105 = vtanh.pop %v102
    %v106 = vpack.c.bf16 %v105, %v105
    %v111 = vunpack.c.l.b16 %v19
    %v112 = vunpack.c.l.b16 %v20
    %v113 = vunpack.c.l.b16 %v21
    %v114 = vunpack.c.l.b16 %v22
    %v115 = vpack.c.b16 %v112, %v111
    %v116 = vpack.c.b16 %v114, %v113
    %vm119 = vcmask 261120
    %v121 = vsel %vm119, %v106, 0
    %123 = vmatprep.subr.bf16.mxu0 0
    %124 = vmatpush1.bf16.msra.mxu0 0
    %125 = vmatprep.subr.bf16.mxu0 0
    %126 = vmatpush1.bf16.msra.mxu0 0
    %127 = vmatprep.subr.bf16.mxu0 0
    %128 = vmatpush1.bf16.msra.mxu0 0
    %129 = vmatprep.subr.bf16.mxu0 0
    %130 = vmatpush1.bf16.msra.mxu0 0
    %131 = vmatprep.subr.bf16.mxu0 0
    %132 = vmatpush1.bf16.msra.mxu0 0
    %133 = vmatprep.subr.bf16.mxu0 0
    %134 = vmatpush1.bf16.msra.mxu0 0
    %135 = vmatprep.subr.bf16.mxu0 0
    %136 = vmatpush1.bf16.msra.mxu0 %v116
    %137 = vmatprep.subr.bf16.mxu0 0
    %138 = vmatpush1.bf16.msra.mxu0 %v115
    %139 = vmatprep.subr.bf16.mxu0 0
    %140 = vmatpush2.bf16.msra.mxu0 0
    %141 = vmatprep.subr.bf16.mxu0 0
    %142 = vmatpush2.bf16.msra.mxu0 0
    %143 = vmatprep.subr.bf16.mxu0 0
    %144 = vmatpush2.bf16.msra.mxu0 0
    %145 = vmatprep.subr.bf16.mxu0 0
    %146 = vmatpush2.bf16.msra.mxu0 0
    %147 = vmatprep.subr.bf16.mxu0 0
    %148 = vmatpush2.bf16.msra.mxu0 0
    %149 = vmatprep.subr.bf16.mxu0 0
    %150 = vmatpush2.bf16.msra.mxu0 0
    %151 = vmatprep.subr.bf16.mxu0 0
    %152 = vmatpush2.bf16.msra.mxu0 0
    %153 = vmatprep.subr.bf16.mxu0 0
    %154 = vmatpush2.bf16.msra.mxu0 0
    %155 = vmatprep.mubr.bf16.mxu0 0
    %156 = vmatmul.mubr.bf16.gmra.mxu0 %v121
    %v157 = vpop.f32.mrf.mxu0
    %v158 = vadd.f32 0.0, %v157
    %v159 = vpop.f32.mrf.mxu0
    %v160 = vpop.f32.mrf.mxu0
    %v161 = vpop.f32.mrf.mxu0
    %162 = vdwg.mxu0
    %163 = vset.pattern.permute.xlu0 1
    %164 = vperm.xlu0 %163, %v16
    %v165 = vpop.permute.xlu0 %164
    %vm166 = vcmp.eq.s32.totalorder %v165, %v24
    %v167 = vsel %vm166, 1, 0
    %v168 = vcvt.s32.f32 %v167
    %v170 = vsel %vm31, %v168, 0
    %172 = vmatprep.subr.mxu0 0.0
    %173 = vmatpush1.msra.mxu0 0.0
    %174 = vmatprep.subr.mxu0 0.0
    %175 = vmatpush1.msra.mxu0 0.0
    %176 = vmatprep.subr.mxu0 0.0
    %177 = vmatpush1.msra.mxu0 0.0
    %178 = vmatprep.subr.mxu0 0.0
    %179 = vmatpush1.msra.mxu0 0.0
    %180 = vmatprep.subr.mxu0 0.0
    %181 = vmatpush1.msra.mxu0 0.0
    %182 = vmatprep.subr.mxu0 0.0
    %183 = vmatpush1.msra.mxu0 0.0
    %184 = vmatprep.subr.mxu0 0.0
    %185 = vmatpush1.msra.mxu0 0.0
    %186 = vmatprep.subr.mxu0 0.0
    %187 = vmatpush1.msra.mxu0 0.0
    %188 = vmatprep.subr.mxu0 0.0
    %189 = vmatpush1.msra.mxu0 0.0
    %190 = vmatprep.subr.mxu0 0.0
    %191 = vmatpush1.msra.mxu0 0.0
    %192 = vmatprep.subr.mxu0 0.0
    %193 = vmatpush1.msra.mxu0 0.0
    %194 = vmatprep.subr.mxu0 0.0
    %195 = vmatpush1.msra.mxu0 0.0
    %196 = vmatprep.subr.mxu0 0.0
    %197 = vmatpush1.msra.mxu0 0.0
    %198 = vmatprep.subr.mxu0 0.0
    %199 = vmatpush1.msra.mxu0 0.0
    %200 = vmatprep.subr.mxu0 0.0
    %201 = vmatpush1.msra.mxu0 %v18
    %202 = vmatprep.subr.mxu0 0.0
    %203 = vmatpush1.msra.mxu0 %v17
    %204 = vmatprep.subr.mxu0 0.0
    %205 = vmatpush2.msra.mxu0 0.0
    %206 = vmatprep.subr.mxu0 0.0
    %207 = vmatpush2.msra.mxu0 0.0
    %208 = vmatprep.subr.mxu0 0.0
    %209 = vmatpush2.msra.mxu0 0.0
    %210 = vmatprep.subr.mxu0 0.0
    %211 = vmatpush2.msra.mxu0 0.0
    %212 = vmatprep.subr.mxu0 0.0
    %213 = vmatpush2.msra.mxu0 0.0
    %214 = vmatprep.subr.mxu0 0.0
    %215 = vmatpush2.msra.mxu0 0.0
    %216 = vmatprep.subr.mxu0 0.0
    %217 = vmatpush2.msra.mxu0 0.0
    %218 = vmatprep.subr.mxu0 0.0
    %219 = vmatpush2.msra.mxu0 0.0
    %220 = vmatprep.subr.mxu0 0.0
    %221 = vmatpush2.msra.mxu0 0.0
    %222 = vmatprep.subr.mxu0 0.0
    %223 = vmatpush2.msra.mxu0 0.0
    %224 = vmatprep.subr.mxu0 0.0
    %225 = vmatpush2.msra.mxu0 0.0
    %226 = vmatprep.subr.mxu0 0.0
    %227 = vmatpush2.msra.mxu0 0.0
    %228 = vmatprep.subr.mxu0 0.0
    %229 = vmatpush2.msra.mxu0 0.0
    %230 = vmatprep.subr.mxu0 0.0
    %231 = vmatpush2.msra.mxu0 0.0
    %232 = vmatprep.subr.mxu0 0.0
    %233 = vmatpush2.msra.mxu0 0.0
    %234 = vmatprep.subr.mxu0 0.0
    %235 = vmatpush2.msra.mxu0 0.0
    %236 = vmatprep.mubr.f32.mxu0 0.0
    %237 = vmatmul.mubr.f32.gmra.mxu0 %v170
    %v238 = vpop.f32.mrf.mxu0
    %v239 = vadd.f32 %v158, %v238
    %v240 = vpop.f32.mrf.mxu0
    %241 = vdwg.mxu0
    %v242 = vtanh.pop %v239
    %v243 = vpack.c.bf16 %v242, %v242
    %v245 = vsel %vm119, %v243, 0
    %247 = vmatprep.subr.bf16.mxu0 0
    %248 = vmatpush1.bf16.msra.mxu0 0
    %249 = vmatprep.subr.bf16.mxu0 0
    %250 = vmatpush1.bf16.msra.mxu0 0
    %251 = vmatprep.subr.bf16.mxu0 0
    %252 = vmatpush1.bf16.msra.mxu0 0
    %253 = vmatprep.subr.bf16.mxu0 0
    %254 = vmatpush1.bf16.msra.mxu0 0
    %255 = vmatprep.subr.bf16.mxu0 0
    %256 = vmatpush1.bf16.msra.mxu0 0
    %257 = vmatprep.subr.bf16.mxu0 0
    %258 = vmatpush1.bf16.msra.mxu0 0
    %259 = vmatprep.subr.bf16.mxu0 0
    %260 = vmatpush1.bf16.msra.mxu0 %v116
    %261 = vmatprep.subr.bf16.mxu0 0
    %262 = vmatpush1.bf16.msra.mxu0 %v115
    %263 = vmatprep.subr.bf16.mxu0 0
    %264 = vmatpush2.bf16.msra.mxu0 0
    %265 = vmatprep.subr.bf16.mxu0 0
    %266 = vmatpush2.bf16.msra.mxu0 0
    %267 = vmatprep.subr.bf16.mxu0 0
    %268 = vmatpush2.bf16.msra.mxu0 0
    %269 = vmatprep.subr.bf16.mxu0 0
    %270 = vmatpush2.bf16.msra.mxu0 0
    %271 = vmatprep.subr.bf16.mxu0 0
    %272 = vmatpush2.bf16.msra.mxu0 0
    %273 = vmatprep.subr.bf16.mxu0 0
    %274 = vmatpush2.bf16.msra.mxu0 0
    %275 = vmatprep.subr.bf16.mxu0 0
    %276 = vmatpush2.bf16.msra.mxu0 0
    %277 = vmatprep.subr.bf16.mxu0 0
    %278 = vmatpush2.bf16.msra.mxu0 0
    %279 = vmatprep.mubr.bf16.mxu0 0
    %280 = vmatmul.mubr.bf16.gmra.mxu0 %v245
    %v281 = vpop.f32.mrf.mxu0
    %v282 = vadd.f32 0.0, %v281
    %v283 = vpop.f32.mrf.mxu0
    %v284 = vpop.f32.mrf.mxu0
    %v285 = vpop.f32.mrf.mxu0
    %286 = vdwg.mxu0
    %287 = vset.pattern.permute.xlu0 2
    %288 = vperm.xlu0 %287, %v16
    %v289 = vpop.permute.xlu0 %288
    %vm290 = vcmp.eq.s32.totalorder %v289, %v24
    %v291 = vsel %vm290, 1, 0
    %v292 = vcvt.s32.f32 %v291
    %v294 = vsel %vm31, %v292, 0
    %296 = vmatprep.subr.mxu0 0.0
    %297 = vmatpush1.msra.mxu0 0.0
    %298 = vmatprep.subr.mxu0 0.0
    %299 = vmatpush1.msra.mxu0 0.0
    %300 = vmatprep.subr.mxu0 0.0
    %301 = vmatpush1.msra.mxu0 0.0
    %302 = vmatprep.subr.mxu0 0.0
    %303 = vmatpush1.msra.mxu0 0.0
    %304 = vmatprep.subr.mxu0 0.0
    %305 = vmatpush1.msra.mxu0 0.0
    %306 = vmatprep.subr.mxu0 0.0
    %307 = vmatpush1.msra.mxu0 0.0
    %308 = vmatprep.subr.mxu0 0.0
    %309 = vmatpush1.msra.mxu0 0.0
    %310 = vmatprep.subr.mxu0 0.0
    %311 = vmatpush1.msra.mxu0 0.0
    %312 = vmatprep.subr.mxu0 0.0
    %313 = vmatpush1.msra.mxu0 0.0
    %314 = vmatprep.subr.mxu0 0.0
    %315 = vmatpush1.msra.mxu0 0.0
    %316 = vmatprep.subr.mxu0 0.0
    %317 = vmatpush1.msra.mxu0 0.0
    %318 = vmatprep.subr.mxu0 0.0
    %319 = vmatpush1.msra.mxu0 0.0
    %320 = vmatprep.subr.mxu0 0.0
    %321 = vmatpush1.msra.mxu0 0.0
    %322 = vmatprep.subr.mxu0 0.0
    %323 = vmatpush1.msra.mxu0 0.0
    %324 = vmatprep.subr.mxu0 0.0
    %325 = vmatpush1.msra.mxu0 %v18
    %326 = vmatprep.subr.mxu0 0.0
    %327 = vmatpush1.msra.mxu0 %v17
    %328 = vmatprep.subr.mxu0 0.0
    %329 = vmatpush2.msra.mxu0 0.0
    %330 = vmatprep.subr.mxu0 0.0
    %331 = vmatpush2.msra.mxu0 0.0
    %332 = vmatprep.subr.mxu0 0.0
    %333 = vmatpush2.msra.mxu0 0.0
    %334 = vmatprep.subr.mxu0 0.0
    %335 = vmatpush2.msra.mxu0 0.0
    %336 = vmatprep.subr.mxu0 0.0
    %337 = vmatpush2.msra.mxu0 0.0
    %338 = vmatprep.subr.mxu0 0.0
    %339 = vmatpush2.msra.mxu0 0.0
    %340 = vmatprep.subr.mxu0 0.0
    %341 = vmatpush2.msra.mxu0 0.0
    %342 = vmatprep.subr.mxu0 0.0
    %343 = vmatpush2.msra.mxu0 0.0
    %344 = vmatprep.subr.mxu0 0.0
    %345 = vmatpush2.msra.mxu0 0.0
    %346 = vmatprep.subr.mxu0 0.0
    %347 = vmatpush2.msra.mxu0 0.0
    %348 = vmatprep.subr.mxu0 0.0
    %349 = vmatpush2.msra.mxu0 0.0
    %350 = vmatprep.subr.mxu0 0.0
    %351 = vmatpush2.msra.mxu0 0.0
    %352 = vmatprep.subr.mxu0 0.0
    %353 = vmatpush2.msra.mxu0 0.0
    %354 = vmatprep.subr.mxu0 0.0
    %355 = vmatpush2.msra.mxu0 0.0
    %356 = vmatprep.subr.mxu0 0.0
    %357 = vmatpush2.msra.mxu0 0.0
    %358 = vmatprep.subr.mxu0 0.0
    %359 = vmatpush2.msra.mxu0 0.0
    %360 = vmatprep.mubr.f32.mxu0 0.0
    %361 = vmatmul.mubr.f32.gmra.mxu0 %v294
    %v362 = vpop.f32.mrf.mxu0
    %v363 = vadd.f32 %v282, %v362
    %v364 = vpop.f32.mrf.mxu0
    %365 = vdwg.mxu0
    %v366 = vtanh.pop %v363
    %v367 = vpack.c.bf16 %v366, %v366
    %v369 = vsel %vm119, %v367, 0
    %371 = vmatprep.subr.bf16.mxu0 0
    %372 = vmatpush1.bf16.msra.mxu0 0
    %373 = vmatprep.subr.bf16.mxu0 0
    %374 = vmatpush1.bf16.msra.mxu0 0
    %375 = vmatprep.subr.bf16.mxu0 0
    %376 = vmatpush1.bf16.msra.mxu0 0
    %377 = vmatprep.subr.bf16.mxu0 0
    %378 = vmatpush1.bf16.msra.mxu0 0
    %379 = vmatprep.subr.bf16.mxu0 0
    %380 = vmatpush1.bf16.msra.mxu0 0
    %381 = vmatprep.subr.bf16.mxu0 0
    %382 = vmatpush1.bf16.msra.mxu0 0
    %383 = vmatprep.subr.bf16.mxu0 0
    %384 = vmatpush1.bf16.msra.mxu0 %v116
    %385 = vmatprep.subr.bf16.mxu0 0
    %386 = vmatpush1.bf16.msra.mxu0 %v115
    %387 = vmatprep.subr.bf16.mxu0 0
    %388 = vmatpush2.bf16.msra.mxu0 0
    %389 = vmatprep.subr.bf16.mxu0 0
    %390 = vmatpush2.bf16.msra.mxu0 0
    %391 = vmatprep.subr.bf16.mxu0 0
    %392 = vmatpush2.bf16.msra.mxu0 0
    %393 = vmatprep.subr.bf16.mxu0 0
    %394 = vmatpush2.bf16.msra.mxu0 0
    %395 = vmatprep.subr.bf16.mxu0 0
    %396 = vmatpush2.bf16.msra.mxu0 0
    %397 = vmatprep.subr.bf16.mxu0 0
    %398 = vmatpush2.bf16.msra.mxu0 0
    %399 = vmatprep.subr.bf16.mxu0 0
    %400 = vmatpush2.bf16.msra.mxu0 0
    %401 = vmatprep.subr.bf16.mxu0 0
    %402 = vmatpush2.bf16.msra.mxu0 0
    %403 = vmatprep.mubr.bf16.mxu0 0
    %404 = vmatmul.mubr.bf16.gmra.mxu0 %v369
    %v405 = vpop.f32.mrf.mxu0
    %v406 = vadd.f32 0.0, %v405
    %v407 = vpop.f32.mrf.mxu0
    %v408 = vpop.f32.mrf.mxu0
    %v409 = vpop.f32.mrf.mxu0
    %410 = vdwg.mxu0
    %411 = vset.pattern.permute.xlu0 3
    %412 = vperm.xlu0 %411, %v16
    %v413 = vpop.permute.xlu0 %412
    %vm414 = vcmp.eq.s32.totalorder %v413, %v24
    %v415 = vsel %vm414, 1, 0
    %v416 = vcvt.s32.f32 %v415
    %v418 = vsel %vm31, %v416, 0
    %420 = vmatprep.subr.mxu0 0.0
    %421 = vmatpush1.msra.mxu0 0.0
    %422 = vmatprep.subr.mxu0 0.0
    %423 = vmatpush1.msra.mxu0 0.0
    %424 = vmatprep.subr.mxu0 0.0
    %425 = vmatpush1.msra.mxu0 0.0
    %426 = vmatprep.subr.mxu0 0.0
    %427 = vmatpush1.msra.mxu0 0.0
    %428 = vmatprep.subr.mxu0 0.0
    %429 = vmatpush1.msra.mxu0 0.0
    %430 = vmatprep.subr.mxu0 0.0
    %431 = vmatpush1.msra.mxu0 0.0
    %432 = vmatprep.subr.mxu0 0.0
    %433 = vmatpush1.msra.mxu0 0.0
    %434 = vmatprep.subr.mxu0 0.0
    %435 = vmatpush1.msra.mxu0 0.0
    %436 = vmatprep.subr.mxu0 0.0
    %437 = vmatpush1.msra.mxu0 0.0
    %438 = vmatprep.subr.mxu0 0.0
    %439 = vmatpush1.msra.mxu0 0.0
    %440 = vmatprep.subr.mxu0 0.0
    %441 = vmatpush1.msra.mxu0 0.0
    %442 = vmatprep.subr.mxu0 0.0
    %443 = vmatpush1.msra.mxu0 0.0
    %444 = vmatprep.subr.mxu0 0.0
    %445 = vmatpush1.msra.mxu0 0.0
    %446 = vmatprep.subr.mxu0 0.0
    %447 = vmatpush1.msra.mxu0 0.0
    %448 = vmatprep.subr.mxu0 0.0
    %449 = vmatpush1.msra.mxu0 %v18
    %450 = vmatprep.subr.mxu0 0.0
    %451 = vmatpush1.msra.mxu0 %v17
    %452 = vmatprep.subr.mxu0 0.0
    %453 = vmatpush2.msra.mxu0 0.0
    %454 = vmatprep.subr.mxu0 0.0
    %455 = vmatpush2.msra.mxu0 0.0
    %456 = vmatprep.subr.mxu0 0.0
    %457 = vmatpush2.msra.mxu0 0.0
    %458 = vmatprep.subr.mxu0 0.0
    %459 = vmatpush2.msra.mxu0 0.0
    %460 = vmatprep.subr.mxu0 0.0
    %461 = vmatpush2.msra.mxu0 0.0
    %462 = vmatprep.subr.mxu0 0.0
    %463 = vmatpush2.msra.mxu0 0.0
    %464 = vmatprep.subr.mxu0 0.0
    %465 = vmatpush2.msra.mxu0 0.0
    %466 = vmatprep.subr.mxu0 0.0
    %467 = vmatpush2.msra.mxu0 0.0
    %468 = vmatprep.subr.mxu0 0.0
    %469 = vmatpush2.msra.mxu0 0.0
    %470 = vmatprep.subr.mxu0 0.0
    %471 = vmatpush2.msra.mxu0 0.0
    %472 = vmatprep.subr.mxu0 0.0
    %473 = vmatpush2.msra.mxu0 0.0
    %474 = vmatprep.subr.mxu0 0.0
    %475 = vmatpush2.msra.mxu0 0.0
    %476 = vmatprep.subr.mxu0 0.0
    %477 = vmatpush2.msra.mxu0 0.0
    %478 = vmatprep.subr.mxu0 0.0
    %479 = vmatpush2.msra.mxu0 0.0
    %480 = vmatprep.subr.mxu0 0.0
    %481 = vmatpush2.msra.mxu0 0.0
    %482 = vmatprep.subr.mxu0 0.0
    %483 = vmatpush2.msra.mxu0 0.0
    %484 = vmatprep.mubr.f32.mxu0 0.0
    %485 = vmatmul.mubr.f32.gmra.mxu0 %v418
    %v486 = vpop.f32.mrf.mxu0
    %v487 = vadd.f32 %v406, %v486
    %v488 = vpop.f32.mrf.mxu0
    %489 = vdwg.mxu0
    %v490 = vtanh.pop %v487
    %v491 = vpack.c.bf16 %v490, %v490
    %v493 = vsel %vm119, %v491, 0
    %495 = vmatprep.subr.bf16.mxu0 0
    %496 = vmatpush1.bf16.msra.mxu0 0
    %497 = vmatprep.subr.bf16.mxu0 0
    %498 = vmatpush1.bf16.msra.mxu0 0
    %499 = vmatprep.subr.bf16.mxu0 0
    %500 = vmatpush1.bf16.msra.mxu0 0
    %501 = vmatprep.subr.bf16.mxu0 0
    %502 = vmatpush1.bf16.msra.mxu0 0
    %503 = vmatprep.subr.bf16.mxu0 0
    %504 = vmatpush1.bf16.msra.mxu0 0
    %505 = vmatprep.subr.bf16.mxu0 0
    %506 = vmatpush1.bf16.msra.mxu0 0
    %507 = vmatprep.subr.bf16.mxu0 0
    %508 = vmatpush1.bf16.msra.mxu0 %v116
    %509 = vmatprep.subr.bf16.mxu0 0
    %510 = vmatpush1.bf16.msra.mxu0 %v115
    %511 = vmatprep.subr.bf16.mxu0 0
    %512 = vmatpush2.bf16.msra.mxu0 0
    %513 = vmatprep.subr.bf16.mxu0 0
    %514 = vmatpush2.bf16.msra.mxu0 0
    %515 = vmatprep.subr.bf16.mxu0 0
    %516 = vmatpush2.bf16.msra.mxu0 0
    %517 = vmatprep.subr.bf16.mxu0 0
    %518 = vmatpush2.bf16.msra.mxu0 0
    %519 = vmatprep.subr.bf16.mxu0 0
    %520 = vmatpush2.bf16.msra.mxu0 0
    %521 = vmatprep.subr.bf16.mxu0 0
    %522 = vmatpush2.bf16.msra.mxu0 0
    %523 = vmatprep.subr.bf16.mxu0 0
    %524 = vmatpush2.bf16.msra.mxu0 0
    %525 = vmatprep.subr.bf16.mxu0 0
    %526 = vmatpush2.bf16.msra.mxu0 0
    %527 = vmatprep.mubr.bf16.mxu0 0
    %528 = vmatmul.mubr.bf16.gmra.mxu0 %v493
    %v529 = vpop.f32.mrf.mxu0
    %v530 = vadd.f32 0.0, %v529
    %v531 = vpop.f32.mrf.mxu0
    %v532 = vpop.f32.mrf.mxu0
    %v533 = vpop.f32.mrf.mxu0
    %534 = vdwg.mxu0
    %535 = vset.pattern.permute.xlu0 4
    %536 = vperm.xlu0 %535, %v16
    %v537 = vpop.permute.xlu0 %536
    %vm538 = vcmp.eq.s32.totalorder %v537, %v24
    %v539 = vsel %vm538, 1, 0
    %v540 = vcvt.s32.f32 %v539
    %v542 = vsel %vm31, %v540, 0
    %544 = vmatprep.subr.mxu0 0.0
    %545 = vmatpush1.msra.mxu0 0.0
    %546 = vmatprep.subr.mxu0 0.0
    %547 = vmatpush1.msra.mxu0 0.0
    %548 = vmatprep.subr.mxu0 0.0
    %549 = vmatpush1.msra.mxu0 0.0
    %550 = vmatprep.subr.mxu0 0.0
    %551 = vmatpush1.msra.mxu0 0.0
    %552 = vmatprep.subr.mxu0 0.0
    %553 = vmatpush1.msra.mxu0 0.0
    %554 = vmatprep.subr.mxu0 0.0
    %555 = vmatpush1.msra.mxu0 0.0
    %556 = vmatprep.subr.mxu0 0.0
    %557 = vmatpush1.msra.mxu0 0.0
    %558 = vmatprep.subr.mxu0 0.0
    %559 = vmatpush1.msra.mxu0 0.0
    %560 = vmatprep.subr.mxu0 0.0
    %561 = vmatpush1.msra.mxu0 0.0
    %562 = vmatprep.subr.mxu0 0.0
    %563 = vmatpush1.msra.mxu0 0.0
    %564 = vmatprep.subr.mxu0 0.0
    %565 = vmatpush1.msra.mxu0 0.0
    %566 = vmatprep.subr.mxu0 0.0
    %567 = vmatpush1.msra.mxu0 0.0
    %568 = vmatprep.subr.mxu0 0.0
    %569 = vmatpush1.msra.mxu0 0.0
    %570 = vmatprep.subr.mxu0 0.0
    %571 = vmatpush1.msra.mxu0 0.0
    %572 = vmatprep.subr.mxu0 0.0
    %573 = vmatpush1.msra.mxu0 %v18
    %574 = vmatprep.subr.mxu0 0.0
    %575 = vmatpush1.msra.mxu0 %v17
    %576 = vmatprep.subr.mxu0 0.0
    %577 = vmatpush2.msra.mxu0 0.0
    %578 = vmatprep.subr.mxu0 0.0
    %579 = vmatpush2.msra.mxu0 0.0
    %580 = vmatprep.subr.mxu0 0.0
    %581 = vmatpush2.msra.mxu0 0.0
    %582 = vmatprep.subr.mxu0 0.0
    %583 = vmatpush2.msra.mxu0 0.0
    %584 = vmatprep.subr.mxu0 0.0
    %585 = vmatpush2.msra.mxu0 0.0
    %586 = vmatprep.subr.mxu0 0.0
    %587 = vmatpush2.msra.mxu0 0.0
    %588 = vmatprep.subr.mxu0 0.0
    %589 = vmatpush2.msra.mxu0 0.0
    %590 = vmatprep.subr.mxu0 0.0
    %591 = vmatpush2.msra.mxu0 0.0
    %592 = vmatprep.subr.mxu0 0.0
    %593 = vmatpush2.msra.mxu0 0.0
    %594 = vmatprep.subr.mxu0 0.0
    %595 = vmatpush2.msra.mxu0 0.0
    %596 = vmatprep.subr.mxu0 0.0
    %597 = vmatpush2.msra.mxu0 0.0
    %598 = vmatprep.subr.mxu0 0.0
    %599 = vmatpush2.msra.mxu0 0.0
    %600 = vmatprep.subr.mxu0 0.0
    %601 = vmatpush2.msra.mxu0 0.0
    %602 = vmatprep.subr.mxu0 0.0
    %603 = vmatpush2.msra.mxu0 0.0
    %604 = vmatprep.subr.mxu0 0.0
    %605 = vmatpush2.msra.mxu0 0.0
    %606 = vmatprep.subr.mxu0 0.0
    %607 = vmatpush2.msra.mxu0 0.0
    %608 = vmatprep.mubr.f32.mxu0 0.0
    %609 = vmatmul.mubr.f32.gmra.mxu0 %v542
    %v610 = vpop.f32.mrf.mxu0
    %v611 = vadd.f32 %v530, %v610
    %v612 = vpop.f32.mrf.mxu0
    %613 = vdwg.mxu0
    %v614 = vtanh.pop %v611
    %v615 = vpack.c.bf16 %v614, %v614
    %v617 = vsel %vm119, %v615, 0
    %619 = vmatprep.subr.bf16.mxu0 0
    %620 = vmatpush1.bf16.msra.mxu0 0
    %621 = vmatprep.subr.bf16.mxu0 0
    %622 = vmatpush1.bf16.msra.mxu0 0
    %623 = vmatprep.subr.bf16.mxu0 0
    %624 = vmatpush1.bf16.msra.mxu0 0
    %625 = vmatprep.subr.bf16.mxu0 0
    %626 = vmatpush1.bf16.msra.mxu0 0
    %627 = vmatprep.subr.bf16.mxu0 0
    %628 = vmatpush1.bf16.msra.mxu0 0
    %629 = vmatprep.subr.bf16.mxu0 0
    %630 = vmatpush1.bf16.msra.mxu0 0
    %631 = vmatprep.subr.bf16.mxu0 0
    %632 = vmatpush1.bf16.msra.mxu0 %v116
    %633 = vmatprep.subr.bf16.mxu0 0
    %634 = vmatpush1.bf16.msra.mxu0 %v115
    %635 = vmatprep.subr.bf16.mxu0 0
    %636 = vmatpush2.bf16.msra.mxu0 0
    %637 = vmatprep.subr.bf16.mxu0 0
    %638 = vmatpush2.bf16.msra.mxu0 0
    %639 = vmatprep.subr.bf16.mxu0 0
    %640 = vmatpush2.bf16.msra.mxu0 0
    %641 = vmatprep.subr.bf16.mxu0 0
    %642 = vmatpush2.bf16.msra.mxu0 0
    %643 = vmatprep.subr.bf16.mxu0 0
    %644 = vmatpush2.bf16.msra.mxu0 0
    %645 = vmatprep.subr.bf16.mxu0 0
    %646 = vmatpush2.bf16.msra.mxu0 0
    %647 = vmatprep.subr.bf16.mxu0 0
    %648 = vmatpush2.bf16.msra.mxu0 0
    %649 = vmatprep.subr.bf16.mxu0 0
    %650 = vmatpush2.bf16.msra.mxu0 0
    %651 = vmatprep.mubr.bf16.mxu0 0
    %652 = vmatmul.mubr.bf16.gmra.mxu0 %v617
    %v653 = vpop.f32.mrf.mxu0
    %v654 = vadd.f32 0.0, %v653
    %v655 = vpop.f32.mrf.mxu0
    %v656 = vpop.f32.mrf.mxu0
    %v657 = vpop.f32.mrf.mxu0
    %658 = vdwg.mxu0
    %659 = vset.pattern.permute.xlu0 5
    %660 = vperm.xlu0 %659, %v16
    %v661 = vpop.permute.xlu0 %660
    %vm662 = vcmp.eq.s32.totalorder %v661, %v24
    %v663 = vsel %vm662, 1, 0
    %v664 = vcvt.s32.f32 %v663
    %v666 = vsel %vm31, %v664, 0
    %668 = vmatprep.subr.mxu0 0.0
    %669 = vmatpush1.msra.mxu0 0.0
    %670 = vmatprep.subr.mxu0 0.0
    %671 = vmatpush1.msra.mxu0 0.0
    %672 = vmatprep.subr.mxu0 0.0
    %673 = vmatpush1.msra.mxu0 0.0
    %674 = vmatprep.subr.mxu0 0.0
    %675 = vmatpush1.msra.mxu0 0.0
    %676 = vmatprep.subr.mxu0 0.0
    %677 = vmatpush1.msra.mxu0 0.0
    %678 = vmatprep.subr.mxu0 0.0
    %679 = vmatpush1.msra.mxu0 0.0
    %680 = vmatprep.subr.mxu0 0.0
    %681 = vmatpush1.msra.mxu0 0.0
    %682 = vmatprep.subr.mxu0 0.0
    %683 = vmatpush1.msra.mxu0 0.0
    %684 = vmatprep.subr.mxu0 0.0
    %685 = vmatpush1.msra.mxu0 0.0
    %686 = vmatprep.subr.mxu0 0.0
    %687 = vmatpush1.msra.mxu0 0.0
    %688 = vmatprep.subr.mxu0 0.0
    %689 = vmatpush1.msra.mxu0 0.0
    %690 = vmatprep.subr.mxu0 0.0
    %691 = vmatpush1.msra.mxu0 0.0
    %692 = vmatprep.subr.mxu0 0.0
    %693 = vmatpush1.msra.mxu0 0.0
    %694 = vmatprep.subr.mxu0 0.0
    %695 = vmatpush1.msra.mxu0 0.0
    %696 = vmatprep.subr.mxu0 0.0
    %697 = vmatpush1.msra.mxu0 %v18
    %698 = vmatprep.subr.mxu0 0.0
    %699 = vmatpush1.msra.mxu0 %v17
    %700 = vmatprep.subr.mxu0 0.0
    %701 = vmatpush2.msra.mxu0 0.0
    %702 = vmatprep.subr.mxu0 0.0
    %703 = vmatpush2.msra.mxu0 0.0
    %704 = vmatprep.subr.mxu0 0.0
    %705 = vmatpush2.msra.mxu0 0.0
    %706 = vmatprep.subr.mxu0 0.0
    %707 = vmatpush2.msra.mxu0 0.0
    %708 = vmatprep.subr.mxu0 0.0
    %709 = vmatpush2.msra.mxu0 0.0
    %710 = vmatprep.subr.mxu0 0.0
    %711 = vmatpush2.msra.mxu0 0.0
    %712 = vmatprep.subr.mxu0 0.0
    %713 = vmatpush2.msra.mxu0 0.0
    %714 = vmatprep.subr.mxu0 0.0
    %715 = vmatpush2.msra.mxu0 0.0
    %716 = vmatprep.subr.mxu0 0.0
    %717 = vmatpush2.msra.mxu0 0.0
    %718 = vmatprep.subr.mxu0 0.0
    %719 = vmatpush2.msra.mxu0 0.0
    %720 = vmatprep.subr.mxu0 0.0
    %721 = vmatpush2.msra.mxu0 0.0
    %722 = vmatprep.subr.mxu0 0.0
    %723 = vmatpush2.msra.mxu0 0.0
    %724 = vmatprep.subr.mxu0 0.0
    %725 = vmatpush2.msra.mxu0 0.0
    %726 = vmatprep.subr.mxu0 0.0
    %727 = vmatpush2.msra.mxu0 0.0
    %728 = vmatprep.subr.mxu0 0.0
    %729 = vmatpush2.msra.mxu0 0.0
    %730 = vmatprep.subr.mxu0 0.0
    %731 = vmatpush2.msra.mxu0 0.0
    %732 = vmatprep.mubr.f32.mxu0 0.0
    %733 = vmatmul.mubr.f32.gmra.mxu0 %v666
    %v734 = vpop.f32.mrf.mxu0
    %v735 = vadd.f32 %v654, %v734
    %v736 = vpop.f32.mrf.mxu0
    %737 = vdwg.mxu0
    %v738 = vtanh.pop %v735
    %v739 = vpack.c.bf16 %v738, %v738
    %v741 = vsel %vm119, %v739, 0
    %743 = vmatprep.subr.bf16.mxu0 0
    %744 = vmatpush1.bf16.msra.mxu0 0
    %745 = vmatprep.subr.bf16.mxu0 0
    %746 = vmatpush1.bf16.msra.mxu0 0
    %747 = vmatprep.subr.bf16.mxu0 0
    %748 = vmatpush1.bf16.msra.mxu0 0
    %749 = vmatprep.subr.bf16.mxu0 0
    %750 = vmatpush1.bf16.msra.mxu0 0
    %751 = vmatprep.subr.bf16.mxu0 0
    %752 = vmatpush1.bf16.msra.mxu0 0
    %753 = vmatprep.subr.bf16.mxu0 0
    %754 = vmatpush1.bf16.msra.mxu0 0
    %755 = vmatprep.subr.bf16.mxu0 0
    %756 = vmatpush1.bf16.msra.mxu0 %v116
    %757 = vmatprep.subr.bf16.mxu0 0
    %758 = vmatpush1.bf16.msra.mxu0 %v115
    %759 = vmatprep.subr.bf16.mxu0 0
    %760 = vmatpush2.bf16.msra.mxu0 0
    %761 = vmatprep.subr.bf16.mxu0 0
    %762 = vmatpush2.bf16.msra.mxu0 0
    %763 = vmatprep.subr.bf16.mxu0 0
    %764 = vmatpush2.bf16.msra.mxu0 0
    %765 = vmatprep.subr.bf16.mxu0 0
    %766 = vmatpush2.bf16.msra.mxu0 0
    %767 = vmatprep.subr.bf16.mxu0 0
    %768 = vmatpush2.bf16.msra.mxu0 0
    %769 = vmatprep.subr.bf16.mxu0 0
    %770 = vmatpush2.bf16.msra.mxu0 0
    %771 = vmatprep.subr.bf16.mxu0 0
    %772 = vmatpush2.bf16.msra.mxu0 0
    %773 = vmatprep.subr.bf16.mxu0 0
    %774 = vmatpush2.bf16.msra.mxu0 0
    %775 = vmatprep.mubr.bf16.mxu0 0
    %776 = vmatmul.mubr.bf16.gmra.mxu0 %v741
    %v777 = vpop.f32.mrf.mxu0
    %v778 = vadd.f32 0.0, %v777
    %v779 = vpop.f32.mrf.mxu0
    %v780 = vpop.f32.mrf.mxu0
    %v781 = vpop.f32.mrf.mxu0
    %782 = vdwg.mxu0
    %783 = vset.pattern.permute.xlu0 6
    %784 = vperm.xlu0 %783, %v16
    %v785 = vpop.permute.xlu0 %784
    %vm786 = vcmp.eq.s32.totalorder %v785, %v24
    %v787 = vsel %vm786, 1, 0
    %v788 = vcvt.s32.f32 %v787
    %v790 = vsel %vm31, %v788, 0
    %792 = vmatprep.subr.mxu0 0.0
    %793 = vmatpush1.msra.mxu0 0.0
    %794 = vmatprep.subr.mxu0 0.0
    %795 = vmatpush1.msra.mxu0 0.0
    %796 = vmatprep.subr.mxu0 0.0
    %797 = vmatpush1.msra.mxu0 0.0
    %798 = vmatprep.subr.mxu0 0.0
    %799 = vmatpush1.msra.mxu0 0.0
    %800 = vmatprep.subr.mxu0 0.0
    %801 = vmatpush1.msra.mxu0 0.0
    %802 = vmatprep.subr.mxu0 0.0
    %803 = vmatpush1.msra.mxu0 0.0
    %804 = vmatprep.subr.mxu0 0.0
    %805 = vmatpush1.msra.mxu0 0.0
    %806 = vmatprep.subr.mxu0 0.0
    %807 = vmatpush1.msra.mxu0 0.0
    %808 = vmatprep.subr.mxu0 0.0
    %809 = vmatpush1.msra.mxu0 0.0
    %810 = vmatprep.subr.mxu0 0.0
    %811 = vmatpush1.msra.mxu0 0.0
    %812 = vmatprep.subr.mxu0 0.0
    %813 = vmatpush1.msra.mxu0 0.0
    %814 = vmatprep.subr.mxu0 0.0
    %815 = vmatpush1.msra.mxu0 0.0
    %816 = vmatprep.subr.mxu0 0.0
    %817 = vmatpush1.msra.mxu0 0.0
    %818 = vmatprep.subr.mxu0 0.0
    %819 = vmatpush1.msra.mxu0 0.0
    %820 = vmatprep.subr.mxu0 0.0
    %821 = vmatpush1.msra.mxu0 %v18
    %822 = vmatprep.subr.mxu0 0.0
    %823 = vmatpush1.msra.mxu0 %v17
    %824 = vmatprep.subr.mxu0 0.0
    %825 = vmatpush2.msra.mxu0 0.0
    %826 = vmatprep.subr.mxu0 0.0
    %827 = vmatpush2.msra.mxu0 0.0
    %828 = vmatprep.subr.mxu0 0.0
    %829 = vmatpush2.msra.mxu0 0.0
    %830 = vmatprep.subr.mxu0 0.0
    %831 = vmatpush2.msra.mxu0 0.0
    %832 = vmatprep.subr.mxu0 0.0
    %833 = vmatpush2.msra.mxu0 0.0
    %834 = vmatprep.subr.mxu0 0.0
    %835 = vmatpush2.msra.mxu0 0.0
    %836 = vmatprep.subr.mxu0 0.0
    %837 = vmatpush2.msra.mxu0 0.0
    %838 = vmatprep.subr.mxu0 0.0
    %839 = vmatpush2.msra.mxu0 0.0
    %840 = vmatprep.subr.mxu0 0.0
    %841 = vmatpush2.msra.mxu0 0.0
    %842 = vmatprep.subr.mxu0 0.0
    %843 = vmatpush2.msra.mxu0 0.0
    %844 = vmatprep.subr.mxu0 0.0
    %845 = vmatpush2.msra.mxu0 0.0
    %846 = vmatprep.subr.mxu0 0.0
    %847 = vmatpush2.msra.mxu0 0.0
    %848 = vmatprep.subr.mxu0 0.0
    %849 = vmatpush2.msra.mxu0 0.0
    %850 = vmatprep.subr.mxu0 0.0
    %851 = vmatpush2.msra.mxu0 0.0
    %852 = vmatprep.subr.mxu0 0.0
    %853 = vmatpush2.msra.mxu0 0.0
    %854 = vmatprep.subr.mxu0 0.0
    %855 = vmatpush2.msra.mxu0 0.0
    %856 = vmatprep.mubr.f32.mxu0 0.0
    %857 = vmatmul.mubr.f32.gmra.mxu0 %v790
    %v858 = vpop.f32.mrf.mxu0
    %v859 = vadd.f32 %v778, %v858
    %v860 = vpop.f32.mrf.mxu0
    %861 = vdwg.mxu0
    %v862 = vtanh.pop %v859
    %v863 = vpack.c.bf16 %v862, %v862
    %v865 = vsel %vm119, %v863, 0
    %867 = vmatprep.subr.bf16.mxu0 0
    %868 = vmatpush1.bf16.msra.mxu0 0
    %869 = vmatprep.subr.bf16.mxu0 0
    %870 = vmatpush1.bf16.msra.mxu0 0
    %871 = vmatprep.subr.bf16.mxu0 0
    %872 = vmatpush1.bf16.msra.mxu0 0
    %873 = vmatprep.subr.bf16.mxu0 0
    %874 = vmatpush1.bf16.msra.mxu0 0
    %875 = vmatprep.subr.bf16.mxu0 0
    %876 = vmatpush1.bf16.msra.mxu0 0
    %877 = vmatprep.subr.bf16.mxu0 0
    %878 = vmatpush1.bf16.msra.mxu0 0
    %879 = vmatprep.subr.bf16.mxu0 0
    %880 = vmatpush1.bf16.msra.mxu0 %v116
    %881 = vmatprep.subr.bf16.mxu0 0
    %882 = vmatpush1.bf16.msra.mxu0 %v115
    %883 = vmatprep.subr.bf16.mxu0 0
    %884 = vmatpush2.bf16.msra.mxu0 0
    %885 = vmatprep.subr.bf16.mxu0 0
    %886 = vmatpush2.bf16.msra.mxu0 0
    %887 = vmatprep.subr.bf16.mxu0 0
    %888 = vmatpush2.bf16.msra.mxu0 0
    %889 = vmatprep.subr.bf16.mxu0 0
    %890 = vmatpush2.bf16.msra.mxu0 0
    %891 = vmatprep.subr.bf16.mxu0 0
    %892 = vmatpush2.bf16.msra.mxu0 0
    %893 = vmatprep.subr.bf16.mxu0 0
    %894 = vmatpush2.bf16.msra.mxu0 0
    %895 = vmatprep.subr.bf16.mxu0 0
    %896 = vmatpush2.bf16.msra.mxu0 0
    %897 = vmatprep.subr.bf16.mxu0 0
    %898 = vmatpush2.bf16.msra.mxu0 0
    %899 = vmatprep.mubr.bf16.mxu0 0
    %900 = vmatmul.mubr.bf16.gmra.mxu0 %v865
    %v901 = vpop.f32.mrf.mxu0
    %v902 = vadd.f32 0.0, %v901
    %v903 = vpop.f32.mrf.mxu0
    %v904 = vpop.f32.mrf.mxu0
    %v905 = vpop.f32.mrf.mxu0
    %906 = vdwg.mxu0
    %907 = vset.pattern.permute.xlu0 7
    %908 = vperm.xlu0 %907, %v16
    %v909 = vpop.permute.xlu0 %908
    %vm910 = vcmp.eq.s32.totalorder %v909, %v24
    %v911 = vsel %vm910, 1, 0
    %v912 = vcvt.s32.f32 %v911
    %v914 = vsel %vm31, %v912, 0
    %916 = vmatprep.subr.mxu0 0.0
    %917 = vmatpush1.msra.mxu0 0.0
    %918 = vmatprep.subr.mxu0 0.0
    %919 = vmatpush1.msra.mxu0 0.0
    %920 = vmatprep.subr.mxu0 0.0
    %921 = vmatpush1.msra.mxu0 0.0
    %922 = vmatprep.subr.mxu0 0.0
    %923 = vmatpush1.msra.mxu0 0.0
    %924 = vmatprep.subr.mxu0 0.0
    %925 = vmatpush1.msra.mxu0 0.0
    %926 = vmatprep.subr.mxu0 0.0
    %927 = vmatpush1.msra.mxu0 0.0
    %928 = vmatprep.subr.mxu0 0.0
    %929 = vmatpush1.msra.mxu0 0.0
    %930 = vmatprep.subr.mxu0 0.0
    %931 = vmatpush1.msra.mxu0 0.0
    %932 = vmatprep.subr.mxu0 0.0
    %933 = vmatpush1.msra.mxu0 0.0
    %934 = vmatprep.subr.mxu0 0.0
    %935 = vmatpush1.msra.mxu0 0.0
    %936 = vmatprep.subr.mxu0 0.0
    %937 = vmatpush1.msra.mxu0 0.0
    %938 = vmatprep.subr.mxu0 0.0
    %939 = vmatpush1.msra.mxu0 0.0
    %940 = vmatprep.subr.mxu0 0.0
    %941 = vmatpush1.msra.mxu0 0.0
    %942 = vmatprep.subr.mxu0 0.0
    %943 = vmatpush1.msra.mxu0 0.0
    %944 = vmatprep.subr.mxu0 0.0
    %945 = vmatpush1.msra.mxu0 %v18
    %946 = vmatprep.subr.mxu0 0.0
    %947 = vmatpush1.msra.mxu0 %v17
    %948 = vmatprep.subr.mxu0 0.0
    %949 = vmatpush2.msra.mxu0 0.0
    %950 = vmatprep.subr.mxu0 0.0
    %951 = vmatpush2.msra.mxu0 0.0
    %952 = vmatprep.subr.mxu0 0.0
    %953 = vmatpush2.msra.mxu0 0.0
    %954 = vmatprep.subr.mxu0 0.0
    %955 = vmatpush2.msra.mxu0 0.0
    %956 = vmatprep.subr.mxu0 0.0
    %957 = vmatpush2.msra.mxu0 0.0
    %958 = vmatprep.subr.mxu0 0.0
    %959 = vmatpush2.msra.mxu0 0.0
    %960 = vmatprep.subr.mxu0 0.0
    %961 = vmatpush2.msra.mxu0 0.0
    %962 = vmatprep.subr.mxu0 0.0
    %963 = vmatpush2.msra.mxu0 0.0
    %964 = vmatprep.subr.mxu0 0.0
    %965 = vmatpush2.msra.mxu0 0.0
    %966 = vmatprep.subr.mxu0 0.0
    %967 = vmatpush2.msra.mxu0 0.0
    %968 = vmatprep.subr.mxu0 0.0
    %969 = vmatpush2.msra.mxu0 0.0
    %970 = vmatprep.subr.mxu0 0.0
    %971 = vmatpush2.msra.mxu0 0.0
    %972 = vmatprep.subr.mxu0 0.0
    %973 = vmatpush2.msra.mxu0 0.0
    %974 = vmatprep.subr.mxu0 0.0
    %975 = vmatpush2.msra.mxu0 0.0
    %976 = vmatprep.subr.mxu0 0.0
    %977 = vmatpush2.msra.mxu0 0.0
    %978 = vmatprep.subr.mxu0 0.0
    %979 = vmatpush2.msra.mxu0 0.0
    %980 = vmatprep.mubr.f32.mxu0 0.0
    %981 = vmatmul.mubr.f32.gmra.mxu0 %v914
    %v982 = vpop.f32.mrf.mxu0
    %v983 = vadd.f32 %v902, %v982
    %v984 = vpop.f32.mrf.mxu0
    %985 = vdwg.mxu0
    %v986 = vtanh.pop %v983
    %vm987 = vcmask 257024
    %988 = vst.msk [vmem:[#allocation2] sm:$0xf] %vm987, %v986
    // Predicated region
    $region14: #{torch_model_forward.1} parent=1 // pred_check
      _
    $region15: #{torch_model_forward.1} parent=1 // pred_check_branch
      %990 = sbr.rel (0) target = $region17
    $region16: #{torch_model_forward.1} parent=1 // pred_region
      %s992 = ssub.s32 64, 64
      %993 = vsyncadd [#allocation3], %s992
      %s995 = sshll.u32 [#allocation2], 4
      %s996 = int_to_ptr.vmem [resolvable:$true] %s995
      %998 = dma.vmem_to_hbm [thread:$0]  %s996, 64, %s3, [#allocation3]
    $region17: #{torch_model_forward.1} parent=1 // pred_fallthru
      _
    // Predicated region
    $region18: #{torch_model_forward.1} parent=1 // pred_check
      _
    $region19: #{torch_model_forward.1} parent=1 // pred_check_branch
      %1000 = sbr.rel (0) target = $region21
    $region20: #{torch_model_forward.1} parent=1 // pred_region
      %1001 = dma.done [#allocation3], 64
    $region21: #{torch_model_forward.1} parent=1 // pred_fallthru
      _
    %1002 = vsyncpa [#allocation3], 1

</llo_original>
